<compile_context>
chip_gen: v7x
topology: tpu7x:2x2x1
jax: 0.10.0
libtpu: 0.0.40
codegen_flags: <defaults>
</compile_context>

<pallas_src>
import functools

import jax
import jax.numpy as jnp
from jax.experimental import pallas as pl
from jax.experimental.pallas import tpu as pltpu


def _round_up(x, m):
    return ((x + m - 1) // m) * m


def _conv_bn_relu_kernel(x_ref, w_ref, scale_ref, shift_ref, o_ref, *, k, d):
    # x_ref:     (1, C_in_pad, L_in_total)  compute dtype, one batch element (NCL)
    # w_ref:     (k, tn, C_in_pad)          compute dtype (weight as (tap, C_out, C_in))
    # scale_ref: (tn, 1)  f32   folded BN scale  gamma / sqrt(var + eps)
    # shift_ref: (tn, 1)  f32   folded BN shift  beta - mean * scale
    # o_ref:     (1, tn, L_out_pad)         compute dtype (NCL output tile)
    tn = o_ref.shape[1]
    l_out_pad = o_ref.shape[2]

    xb = x_ref[0]                                      # (C_in_pad, L_in_total)
    acc = jnp.zeros((tn, l_out_pad), jnp.float32)
    for t in range(k):                                 # k is small & static -> unrolled
        x_t = xb[:, t * d: t * d + l_out_pad]          # (C_in_pad, L_out_pad)
        acc = acc + jnp.dot(w_ref[t], x_t, preferred_element_type=jnp.float32)

    y = acc * scale_ref[...] + shift_ref[...]          # BN (eval) in f32
    o_ref[0] = jnp.maximum(y, 0.0).astype(o_ref.dtype)  # ReLU, cast on store


@functools.partial(jax.jit,
                   static_argnames=("k", "s", "p", "d", "compute_dtype"))
def conv1d_bn_relu(x, weight, gamma, beta, running_mean, running_var,
                   *, k, s=1, p=0, d=1, eps=1e-5,
                   compute_dtype=jnp.bfloat16):
    """x: (N, C_in, L); weight: (C_out, C_in, k).  Returns (N, C_out, L_out)."""
    if s != 1:
        # TODO(synk): stride > 1 is not implemented in the fused kernel.
        raise NotImplementedError("fused conv1d kernel supports stride == 1 only")

    N, C_in, L = x.shape
    C_out = weight.shape[0]
    L_out = (L + 2 * p - d * (k - 1) - 1) // s + 1

    # ---- static tile / pad selection -------------------------------------
    L_out_pad = _round_up(L_out, 128)                          # lane dim of output
    L_in_total = _round_up(max(L + 2 * p, L_out_pad + (k - 1) * d), 128)
    C_in_pad = _round_up(C_in, 128)                            # contraction dim
    c_out_r8 = _round_up(C_out, 8)

    itemsize = jnp.dtype(compute_dtype).itemsize

    def footprint(tn):
        x_b = 2 * C_in_pad * L_in_total * itemsize             # double-buffered input
        w_b = 2 * k * tn * C_in_pad * itemsize                 # double-buffered weights
        o_b = 2 * tn * L_out_pad * itemsize                    # double-buffered output
        acc_b = tn * L_out_pad * 4                             # f32 accumulator value
        tmp_b = 2 * C_in_pad * L_out_pad * itemsize            # tap-slice temporaries
        sc_b = 2 * 2 * tn * 4                                  # scale / shift
        return x_b + w_b + o_b + acc_b + tmp_b + sc_b

    budget = 20 * 1024 * 1024
    tn = 8
    for cand in (1024, 512, 256, 128, 64, 32, 16, 8):
        if cand > c_out_r8:
            continue
        if _round_up(C_out, cand) > c_out_r8 + max(c_out_r8 // 8, 8):
            continue                                           # cap padding bloat
        if footprint(cand) > budget:
            continue
        tn = cand
        break
    # v7x megacore: make sure at least one "parallel" axis has extent >= 2.
    if N * (_round_up(C_out, tn) // tn) < 2 and tn >= 16:
        tn //= 2
    C_out_pad = _round_up(C_out, tn)

    vmem_limit = min(96 * 1024 * 1024,
                     int(footprint(tn) * 1.5) + 12 * 1024 * 1024)

    # ---- operand prep (cast first -> all wrapper passes move fewer bytes) --
    xc = x.astype(compute_dtype)
    x_p = jnp.pad(xc, ((0, 0),
                       (0, C_in_pad - C_in),
                       (p, L_in_total - L - p)))               # (N, C_in_pad, L_in_total)

    w_t = jnp.transpose(weight, (2, 0, 1))                     # (k, C_out, C_in)
    w_p = jnp.pad(w_t, ((0, 0),
                        (0, C_out_pad - C_out),
                        (0, C_in_pad - C_in))).astype(compute_dtype)

    inv_std = jax.lax.rsqrt(running_var + eps)
    scale = (gamma * inv_std).astype(jnp.float32).reshape(C_out, 1)
    shift = (beta - running_mean * gamma * inv_std).astype(jnp.float32).reshape(C_out, 1)
    scale_p = jnp.pad(scale, ((0, C_out_pad - C_out), (0, 0)))
    shift_p = jnp.pad(shift, ((0, C_out_pad - C_out), (0, 0)))

    grid = (N, C_out_pad // tn)

    out = pl.pallas_call(
        functools.partial(_conv_bn_relu_kernel, k=k, d=d),
        out_shape=jax.ShapeDtypeStruct((N, C_out_pad, L_out_pad), compute_dtype),
        grid_spec=pltpu.PrefetchScalarGridSpec(
            num_scalar_prefetch=0,
            grid=grid,
            in_specs=[
                pl.BlockSpec((1, C_in_pad, L_in_total), lambda n, j: (n, 0, 0)),
                pl.BlockSpec((k, tn, C_in_pad), lambda n, j: (0, j, 0)),
                pl.BlockSpec((tn, 1), lambda n, j: (j, 0)),
                pl.BlockSpec((tn, 1), lambda n, j: (j, 0)),
            ],
            out_specs=pl.BlockSpec((1, tn, L_out_pad), lambda n, j: (n, j, 0)),
        ),
        compiler_params=pltpu.CompilerParams(
            dimension_semantics=("parallel", "parallel"),
            vmem_limit_bytes=vmem_limit,
        ),
    )(x_p, w_p, scale_p, shift_p)

    # Output is already in NCL layout -> only a slice remains (no transpose).
    return out[:, :C_out, :L_out]


def _reference(x, weight, gamma, beta, running_mean, running_var,
               *, k, s, p, d, eps=1e-5):
    """Pure-JAX (XLA) reference: conv1d -> eval BN -> ReLU (all fp32)."""
    y = jax.lax.conv_general_dilated(
        x, weight,
        window_strides=(s,),
        padding=[(p, p)],
        rhs_dilation=(d,),
        dimension_numbers=("NCH", "OIH", "NCH"),
    )
    inv_std = jax.lax.rsqrt(running_var + eps)
    scale = (gamma * inv_std)[None, :, None]
    shift = (beta - running_mean * gamma * inv_std)[None, :, None]
    return jnp.maximum(y * scale + shift, 0.0)


if __name__ == "__main__":
    # Small shapes consistent with the Conv module (nn.Conv1d input is NCL).
    N, C_in, L = 2, 4, 16
    C_out, K, S, P, D = 8, 3, 1, 1, 1

    key = jax.random.PRNGKey(0)
    kx, kw, km, kv = jax.random.split(key, 4)

    x = jax.random.normal(kx, (N, C_in, L), dtype=jnp.float32)
    fan_in = C_in * K
    weight = jax.random.normal(kw, (C_out, C_in, K), dtype=jnp.float32) / jnp.sqrt(fan_in)
    gamma = jnp.ones((C_out,), jnp.float32)
    beta = jnp.zeros((C_out,), jnp.float32)
    running_mean = 0.1 * jax.random.normal(km, (C_out,), dtype=jnp.float32)
    running_var = jnp.abs(jax.random.normal(kv, (C_out,), dtype=jnp.float32)) + 0.5

    ref = _reference(x, weight, gamma, beta, running_mean, running_var,
                     k=K, s=S, p=P, d=D)

    # Exact-path check (fp32 MXU inputs, fp32 output) -> tight tolerance.
    out_f32 = conv1d_bn_relu(x, weight, gamma, beta, running_mean, running_var,
                             k=K, s=S, p=P, d=D, compute_dtype=jnp.float32)
    out_f32 = jax.block_until_ready(out_f32)
    assert out_f32.shape == ref.shape == (N, C_out, L)
    assert jnp.allclose(out_f32, ref, atol=1e-4, rtol=1e-4)

    # Fast-path check (bf16 MXU inputs / bf16 output, f32 accumulation).
    out_bf16 = conv1d_bn_relu(x, weight, gamma, beta, running_mean, running_var,
                              k=K, s=S, p=P, d=D, compute_dtype=jnp.bfloat16)
    out_bf16 = jax.block_until_ready(out_bf16)
    assert out_bf16.shape == ref.shape
    assert jnp.allclose(out_bf16.astype(jnp.float32), ref, atol=5e-2, rtol=5e-2)

    print("KERNEL_OK")
</pallas_src>

<mosaic_0001>
module attributes {stable_mosaic.version = 11 : i64} {
  func.func @_conv_bn_relu_kernel(%arg0: i32, %arg1: i32, %arg2: memref<1x128x256xf32, #tpu.memory_space<vmem>>, %arg3: memref<3x8x128xf32, #tpu.memory_space<vmem>>, %arg4: memref<8x1xf32, #tpu.memory_space<vmem>>, %arg5: memref<8x1xf32, #tpu.memory_space<vmem>>, %arg6: memref<1x8x128xf32, #tpu.memory_space<vmem>>) attributes {dimension_semantics = [#tpu.dimension_semantics<parallel>, #tpu.dimension_semantics<parallel>], iteration_bounds = array<i64: 2, 1>, scalar_prefetch = 0 : i64, scratch_operands = 0 : i64, tpu.core_type = #tpu.core_type<tc>, window_params = [{transform_indices = @transform_0, window_bounds = array<i64: 1, 128, 256>}, {transform_indices = @transform_1, window_bounds = array<i64: 3, 8, 128>}, {transform_indices = @transform_2, window_bounds = array<i64: 8, 1>}, {transform_indices = @transform_3, window_bounds = array<i64: 8, 1>}, {transform_indices = @transform_4, window_bounds = array<i64: 1, 8, 128>}]} {
    %c0 = arith.constant 0 : index
    %c0_0 = arith.constant 0 : index
    %c0_1 = arith.constant 0 : index
    %0 = vector.load %arg2[%c0, %c0_0, %c0_1] : memref<1x128x256xf32, #tpu.memory_space<vmem>>, vector<1x128x256xf32>
    %1 = vector.shape_cast %0 : vector<1x128x256xf32> to vector<128x256xf32>
    %cst = arith.constant 0.000000e+00 : f32
    %2 = vector.broadcast %cst : f32 to vector<8x128xf32>
    %3 = vector.extract_strided_slice %1 {offsets = [0, 0], sizes = [128, 128], strides = [1, 1]} : vector<128x256xf32> to vector<128x128xf32>
    %c0_2 = arith.constant 0 : index
    %c0_3 = arith.constant 0 : index
    %c0_4 = arith.constant 0 : index
    %4 = vector.load %arg3[%c0_2, %c0_3, %c0_4] : memref<3x8x128xf32, #tpu.memory_space<vmem>>, vector<1x8x128xf32>
    %5 = vector.shape_cast %4 : vector<1x8x128xf32> to vector<8x128xf32>
    %cst_5 = arith.constant dense<0.000000e+00> : vector<8x128xf32>
    %6 = tpu.matmul %5, %3, %cst_5 {dimension_numbers = #tpu.dot_dimension_numbers<[1], [0], [0], [1], [0, 0, 1, 1], [], []>} : vector<8x128xf32>, vector<128x128xf32>, vector<8x128xf32> -> vector<8x128xf32>
    %7 = arith.addf %2, %6 : vector<8x128xf32>
    %8 = vector.extract_strided_slice %1 {offsets = [0, 1], sizes = [128, 128], strides = [1, 1]} : vector<128x256xf32> to vector<128x128xf32>
    %c1 = arith.constant 1 : index
    %c0_6 = arith.constant 0 : index
    %c0_7 = arith.constant 0 : index
    %9 = vector.load %arg3[%c1, %c0_6, %c0_7] : memref<3x8x128xf32, #tpu.memory_space<vmem>>, vector<1x8x128xf32>
    %10 = vector.shape_cast %9 : vector<1x8x128xf32> to vector<8x128xf32>
    %cst_8 = arith.constant dense<0.000000e+00> : vector<8x128xf32>
    %11 = tpu.matmul %10, %8, %cst_8 {dimension_numbers = #tpu.dot_dimension_numbers<[1], [0], [0], [1], [0, 0, 1, 1], [], []>} : vector<8x128xf32>, vector<128x128xf32>, vector<8x128xf32> -> vector<8x128xf32>
    %12 = arith.addf %7, %11 : vector<8x128xf32>
    %13 = vector.extract_strided_slice %1 {offsets = [0, 2], sizes = [128, 128], strides = [1, 1]} : vector<128x256xf32> to vector<128x128xf32>
    %c2 = arith.constant 2 : index
    %c0_9 = arith.constant 0 : index
    %c0_10 = arith.constant 0 : index
    %14 = vector.load %arg3[%c2, %c0_9, %c0_10] : memref<3x8x128xf32, #tpu.memory_space<vmem>>, vector<1x8x128xf32>
    %15 = vector.shape_cast %14 : vector<1x8x128xf32> to vector<8x128xf32>
    %cst_11 = arith.constant dense<0.000000e+00> : vector<8x128xf32>
    %16 = tpu.matmul %15, %13, %cst_11 {dimension_numbers = #tpu.dot_dimension_numbers<[1], [0], [0], [1], [0, 0, 1, 1], [], []>} : vector<8x128xf32>, vector<128x128xf32>, vector<8x128xf32> -> vector<8x128xf32>
    %17 = arith.addf %12, %16 : vector<8x128xf32>
    %c0_12 = arith.constant 0 : index
    %c0_13 = arith.constant 0 : index
    %18 = vector.load %arg4[%c0_12, %c0_13] : memref<8x1xf32, #tpu.memory_space<vmem>>, vector<8x1xf32>
    %19 = vector.broadcast %18 : vector<8x1xf32> to vector<8x128xf32>
    %20 = arith.mulf %17, %19 : vector<8x128xf32>
    %c0_14 = arith.constant 0 : index
    %c0_15 = arith.constant 0 : index
    %21 = vector.load %arg5[%c0_14, %c0_15] : memref<8x1xf32, #tpu.memory_space<vmem>>, vector<8x1xf32>
    %22 = vector.broadcast %21 : vector<8x1xf32> to vector<8x128xf32>
    %23 = arith.addf %20, %22 : vector<8x128xf32>
    %cst_16 = arith.constant 0.000000e+00 : f32
    %24 = vector.broadcast %cst_16 : f32 to vector<8x128xf32>
    %25 = arith.maximumf %23, %24 : vector<8x128xf32>
    %c0_17 = arith.constant 0 : index
    %c0_18 = arith.constant 0 : index
    %c0_19 = arith.constant 0 : index
    %26 = vector.load %arg6[%c0_17, %c0_18, %c0_19] : memref<1x8x128xf32, #tpu.memory_space<vmem>>, vector<1x8x128xf32>
    %27 = vector.shape_cast %26 : vector<1x8x128xf32> to vector<8x128xf32>
    %28 = vector.shape_cast %25 : vector<8x128xf32> to vector<1x8x128xf32>
    tpu.vector_store %arg6[%c0_17, %c0_18, %c0_19], %28 {strides = array<i32>} : memref<1x8x128xf32, #tpu.memory_space<vmem>>, vector<1x8x128xf32>,
    return
  }
  func.func @transform_0(%arg0: i32, %arg1: i32) -> (i32, i32, i32) {
    %c0_i32 = arith.constant 0 : i32
    %c0_i32_0 = arith.constant 0 : i32
    %c0_i32_1 = arith.constant 0 : i32
    return %arg0, %c0_i32, %c0_i32_0 : i32, i32, i32
  }
  func.func @transform_1(%arg0: i32, %arg1: i32) -> (i32, i32, i32) {
    %c0_i32 = arith.constant 0 : i32
    %c0_i32_0 = arith.constant 0 : i32
    %c0_i32_1 = arith.constant 0 : i32
    return %c0_i32, %arg1, %c0_i32_0 : i32, i32, i32
  }
  func.func @transform_2(%arg0: i32, %arg1: i32) -> (i32, i32) {
    %c0_i32 = arith.constant 0 : i32
    %c0_i32_0 = arith.constant 0 : i32
    return %arg1, %c0_i32 : i32, i32
  }
  func.func @transform_3(%arg0: i32, %arg1: i32) -> (i32, i32) {
    %c0_i32 = arith.constant 0 : i32
    %c0_i32_0 = arith.constant 0 : i32
    return %arg1, %c0_i32 : i32, i32
  }
  func.func @transform_4(%arg0: i32, %arg1: i32) -> (i32, i32, i32) {
    %c0_i32 = arith.constant 0 : i32
    %c0_i32_0 = arith.constant 0 : i32
    return %arg0, %arg1, %c0_i32 : i32, i32, i32
  }
}

</mosaic_0001>

<llo_original>
// kernel: conv1d_bn_relu.1
$region0: #{conv1d_bn_relu.1}
  #allocation0 [shape = 'u32[]', space=smem, size = 0x4, offset = 0x4, fixed_abs, tag = 'smem constant byte address 0x4 - core index']
  #allocation1 [shape = 'u32[144,128]{1,0:T(1,128)}', space=vmem, size = 0x12000, scoped, tag = 'internal scratch']
  %s0 = inlined_call_operand.vmem [shape: f32[2,128,256], index: 0, kind: input, shape index: {}]
  %s1 = inlined_call_operand.vmem [shape: f32[3,8,128], index: 1, kind: input, shape index: {}]
  %s2 = inlined_call_operand.vmem [shape: f32[8,1], index: 2, kind: input, shape index: {}]
  %s3 = inlined_call_operand.vmem [shape: f32[8,1], index: 3, kind: input, shape index: {}]
  %s4 = inlined_call_operand.hbm [shape: f32[2,8,128], index: 4, kind: output, shape index: {}]
  %s5 = sld [smem:[#allocation0]]
  $region49: #{conv1d_bn_relu.1} parent=0
    _
  %s7 = ssub.s32 1, %s5
  %s8 = scalar_select 0, %s7, %s5
  $region1: #{conv1d_bn_relu.1} parent=0
    #allocation2 [shape = 'u8[8192]{0}', space=vmem, size = 0x2000, scoped, tag = 'output window, operand 0']
    #allocation3 [shape = 's32[2]{0}', space=sflag, size = 0x8, scoped, tag = 'scoped memory for conv1d_bn_relu.1']
    %9 = vsyncpa [#allocation3], 0
    %s10 = scalar_lea.sflag [#allocation3], 1
    %11 = vsyncpa %s10, 0
    loop: start=0, step=1, limit=4
    $region2: #{conv1d_bn_relu.1} parent=1 // loop_pre_header
      _
    $region3: #{conv1d_bn_relu.1} parent=1 // loop_header
      %s13 = sphi 0, %s17
      %p14 = scmp.ge.s32.totalorder %s13, 4
      %s20 = sphi 0, %s32
      %s21 = sphi 0, %s28
      %s22 = sphi 0, %s20
      %s23 = sphi 0, %s21
      %s24 = sphi 0, %s22
      %s25 = sphi 0, %s23
      %s35 = sphi 0, %s37
      %s38 = sphi 0, %s35
      %s39 = sphi 0, %s38
      %s55 = sphi 0, %s39
      %s61 = sphi 0, %s63
      %s64 = sphi 0, %s61
      %s65 = sphi 0, %s64
      %s81 = sphi 0, %s65
      %s87 = sphi 0, %s89
      %s90 = sphi 0, %s87
      %s91 = sphi 0, %s90
      %s107 = sphi 0, %s91
      %s113 = sphi 0, %s115
      %s116 = sphi 0, %s113
      %s117 = sphi 0, %s116
      %s133 = sphi 0, %s117
      %s141 = sphi 0, %s143
      %s144 = sphi 0, %s141
      %s145 = sphi 0, %s144
      %s161 = sphi 0, %s145
    $region4: #{conv1d_bn_relu.1} parent=1 // loop_header_branch
      %16 = sbr.rel (%p14) target = $region8
    $region5: #{conv1d_bn_relu.1} parent=1 // loop_body
      %s18 = ssub.s32 %s13, 1
      %s19 = ssub.s32 %s13, 2
      %s26 = sadd.s32 1, %s21
      %p27 = scmp.ge.s32.totalorder %s26, 1
      %s28 = scalar_select %p27, 0, %s26
      %s29 = sadd.s32 1, %s20
      %s30 = scalar_select %p27, %s29, %s20
      %p31 = scmp.ge.s32.totalorder %s30, 2
      %s32 = scalar_select %p31, 0, %s30
      %s33 = ssub.s32 %s20, %s32
      %p34 = scmp.eq.s32.totalorder %s33, 0
      %s36 = sadd.s32 %s35, 1
      %s37 = scalar_select %p34, %s35, %s36
      %p40 = pneg %p34
      %p41 = scmp.eq.s32.totalorder %s13, 1
      %p42 = por %p40, %p41
      %p43 = scmp.ne.s32.totalorder %s35, %s38
      %p44 = scmp.eq.s32.totalorder %s13, 0
      %p45 = por %p43, %p44
      %p46 = scmp.ne.s32.totalorder %s35, %s38
      %p47 = scmp.eq.s32.totalorder %s18, 1
      %p48 = por %p46, %p47
      %p49 = scmp.ne.s32.totalorder %s38, %s39
      %p50 = scmp.eq.s32.totalorder %s18, 0
      %p51 = por %p49, %p50
      %p52 = scmp.ne.s32.totalorder %s38, %s39
      %p53 = scmp.eq.s32.totalorder %s19, 1
      %p54 = por %p52, %p53
      %p56 = scmp.ne.s32.totalorder %s39, %s55
      %p57 = scmp.eq.s32.totalorder %s19, 0
      %p58 = por %p56, %p57
      %s59 = ssub.s32 %s21, %s28
      %p60 = scmp.eq.s32.totalorder %s59, 0
      %s62 = sadd.s32 %s61, 1
      %s63 = scalar_select %p60, %s61, %s62
      %p66 = pneg %p60
      %p67 = scmp.eq.s32.totalorder %s13, 1
      %p68 = por %p66, %p67
      %p69 = scmp.ne.s32.totalorder %s61, %s64
      %p70 = scmp.eq.s32.totalorder %s13, 0
      %p71 = por %p69, %p70
      %p72 = scmp.ne.s32.totalorder %s61, %s64
      %p73 = scmp.eq.s32.totalorder %s18, 1
      %p74 = por %p72, %p73
      %p75 = scmp.ne.s32.totalorder %s64, %s65
      %p76 = scmp.eq.s32.totalorder %s18, 0
      %p77 = por %p75, %p76
      %p78 = scmp.ne.s32.totalorder %s64, %s65
      %p79 = scmp.eq.s32.totalorder %s19, 1
      %p80 = por %p78, %p79
      %p82 = scmp.ne.s32.totalorder %s65, %s81
      %p83 = scmp.eq.s32.totalorder %s19, 0
      %p84 = por %p82, %p83
      %s85 = ssub.s32 %s21, %s28
      %p86 = scmp.eq.s32.totalorder %s85, 0
      %s88 = sadd.s32 %s87, 1
      %s89 = scalar_select %p86, %s87, %s88
      %p92 = pneg %p86
      %p93 = scmp.eq.s32.totalorder %s13, 1
      %p94 = por %p92, %p93
      %p95 = scmp.ne.s32.totalorder %s87, %s90
      %p96 = scmp.eq.s32.totalorder %s13, 0
      %p97 = por %p95, %p96
      %p98 = scmp.ne.s32.totalorder %s87, %s90
      %p99 = scmp.eq.s32.totalorder %s18, 1
      %p100 = por %p98, %p99
      %p101 = scmp.ne.s32.totalorder %s90, %s91
      %p102 = scmp.eq.s32.totalorder %s18, 0
      %p103 = por %p101, %p102
      %p104 = scmp.ne.s32.totalorder %s90, %s91
      %p105 = scmp.eq.s32.totalorder %s19, 1
      %p106 = por %p104, %p105
      %p108 = scmp.ne.s32.totalorder %s91, %s107
      %p109 = scmp.eq.s32.totalorder %s19, 0
      %p110 = por %p108, %p109
      %s111 = ssub.s32 %s21, %s28
      %p112 = scmp.eq.s32.totalorder %s111, 0
      %s114 = sadd.s32 %s113, 1
      %s115 = scalar_select %p112, %s113, %s114
      %p118 = pneg %p112
      %p119 = scmp.eq.s32.totalorder %s13, 1
      %p120 = por %p118, %p119
      %p121 = scmp.ne.s32.totalorder %s113, %s116
      %p122 = scmp.eq.s32.totalorder %s13, 0
      %p123 = por %p121, %p122
      %p124 = scmp.ne.s32.totalorder %s113, %s116
      %p125 = scmp.eq.s32.totalorder %s18, 1
      %p126 = por %p124, %p125
      %p127 = scmp.ne.s32.totalorder %s116, %s117
      %p128 = scmp.eq.s32.totalorder %s18, 0
      %p129 = por %p127, %p128
      %p130 = scmp.ne.s32.totalorder %s116, %s117
      %p131 = scmp.eq.s32.totalorder %s19, 1
      %p132 = por %p130, %p131
      %p134 = scmp.ne.s32.totalorder %s117, %s133
      %p135 = scmp.eq.s32.totalorder %s19, 0
      %p136 = por %p134, %p135
      %s137 = ssub.s32 %s20, %s32
      %s138 = ssub.s32 %s21, %s28
      %s139 = sor.u32 %s137, %s138
      %p140 = scmp.eq.s32.totalorder %s139, 0
      %s142 = sadd.s32 %s141, 1
      %s143 = scalar_select %p140, %s141, %s142
      %p146 = pneg %p140
      %p147 = scmp.eq.s32.totalorder %s13, 1
      %p148 = por %p146, %p147
      %p149 = scmp.ne.s32.totalorder %s141, %s144
      %p150 = scmp.eq.s32.totalorder %s13, 0
      %p151 = por %p149, %p150
      %p152 = scmp.ne.s32.totalorder %s141, %s144
      %p153 = scmp.eq.s32.totalorder %s18, 1
      %p154 = por %p152, %p153
      %p155 = scmp.ne.s32.totalorder %s144, %s145
      %p156 = scmp.eq.s32.totalorder %s18, 0
      %p157 = por %p155, %p156
      %p158 = scmp.ne.s32.totalorder %s144, %s145
      %p159 = scmp.eq.s32.totalorder %s19, 1
      %p160 = por %p158, %p159
      %p162 = scmp.ne.s32.totalorder %s145, %s161
      %p163 = scmp.eq.s32.totalorder %s19, 0
      %p164 = por %p162, %p163
      %p165 = scmp.le.s32.totalorder 1, %s13
      %p166 = scmp.lt.s32.totalorder %s13, 3
      %p167 = pnand %p165, %p166
      %p168 = pneg %p167
      // Predicated region
      $region9: #{conv1d_bn_relu.1} parent=5 // pred_check
        _
      $region10: #{conv1d_bn_relu.1} parent=5 // pred_check_branch
        %170 = sbr.rel (%p167) target = $region12
      $region11: #{conv1d_bn_relu.1} parent=5 // pred_region
        %s171 = ssub.s32 %s13, 1
        // Predicated region
        $region13: #{conv1d_bn_relu.1} parent=11 // pred_check
          %p172 = pneg %p77
        $region14: #{conv1d_bn_relu.1} parent=11 // pred_check_branch
          %174 = sbr.rel (%p172) target = $region16
        $region15: #{conv1d_bn_relu.1} parent=11 // pred_region
          %p175 = scmp.lt.s32.totalorder %s23, 0
          %s176 = scalar_select %p175, %s23, 0
          %s177 = smul.addr %s176, 8
          %s178 = scalar_lea.vmem %s1, %s177
        $region16: #{conv1d_bn_relu.1} parent=11 // pred_fallthru
          _
        // Predicated region
        $region17: #{conv1d_bn_relu.1} parent=11 // pred_check
          %p179 = pneg %p103
        $region18: #{conv1d_bn_relu.1} parent=11 // pred_check_branch
          %181 = sbr.rel (%p179) target = $region20
        $region19: #{conv1d_bn_relu.1} parent=11 // pred_region
          %p182 = scmp.lt.s32.totalorder %s23, 0
          %s183 = scalar_select %p182, %s23, 0
          %s184 = smul.addr %s183, 8
          %s185 = scalar_lea.vmem %s2, %s184
        $region20: #{conv1d_bn_relu.1} parent=11 // pred_fallthru
          _
        // Predicated region
        $region21: #{conv1d_bn_relu.1} parent=11 // pred_check
          %p186 = pneg %p129
        $region22: #{conv1d_bn_relu.1} parent=11 // pred_check_branch
          %188 = sbr.rel (%p186) target = $region24
        $region23: #{conv1d_bn_relu.1} parent=11 // pred_region
          %p189 = scmp.lt.s32.totalorder %s23, 0
          %s190 = scalar_select %p189, %s23, 0
          %s191 = smul.addr %s190, 8
          %s192 = scalar_lea.vmem %s3, %s191
        $region24: #{conv1d_bn_relu.1} parent=11 // pred_fallthru
          _
      $region12: #{conv1d_bn_relu.1} parent=5 // pred_fallthru
        _
      %p193 = scmp.lt.s32.totalorder %s13, 2
      // Predicated region
      $region25: #{conv1d_bn_relu.1} parent=5 // pred_check
        %p194 = pneg %p193
      $region26: #{conv1d_bn_relu.1} parent=5 // pred_check_branch
        %196 = sbr.rel (%p194) target = $region28
      $region27: #{conv1d_bn_relu.1} parent=5 // pred_region
        // Predicated region
        $region29: #{conv1d_bn_relu.1} parent=27 // pred_check
          %p197 = pneg %p45
        $region30: #{conv1d_bn_relu.1} parent=27 // pred_check_branch
          %199 = sbr.rel (%p197) target = $region32
        $region31: #{conv1d_bn_relu.1} parent=27 // pred_region
          %p200 = scmp.lt.s32.totalorder %s20, 1
          %s201 = scalar_select %p200, %s20, 1
          %s202 = smul.addr %s201, 32
          %s203 = smul.addr %s202, 8
          %s204 = scalar_lea.vmem %s0, %s203
        $region32: #{conv1d_bn_relu.1} parent=27 // pred_fallthru
          _
      $region28: #{conv1d_bn_relu.1} parent=5 // pred_fallthru
        _
      %p205 = scmp.le.s32.totalorder 1, %s13
      %p206 = scmp.lt.s32.totalorder %s13, 3
      %p207 = pnand %p205, %p206
      %p208 = pneg %p207
      // Predicated region
      $region33: #{conv1d_bn_relu.1} parent=5 // pred_check
        _
      $region34: #{conv1d_bn_relu.1} parent=5 // pred_check_branch
        %210 = sbr.rel (%p207) target = $region36
      $region35: #{conv1d_bn_relu.1} parent=5 // pred_region
        %s211 = ssub.s32 %s13, 1
        %p212 = scmp.lt.s32.totalorder %s22, 1
        %s213 = scalar_select %p212, %s22, 1
        %s214 = smul.addr %s213, 32
        %s215 = smul.addr %s214, 8
        %s216 = scalar_lea.vmem %s0, %s215
        %p217 = pneg %p51
        %p218 = pneg %p48
        %p219 = scmp.lt.s32.totalorder %s23, 0
        %s220 = scalar_select %p219, %s23, 0
        %s221 = smul.addr %s220, 8
        %s222 = scalar_lea.vmem %s1, %s221
        %p223 = pneg %p77
        %p224 = pneg %p74
        %p225 = scmp.lt.s32.totalorder %s23, 0
        %s226 = scalar_select %p225, %s23, 0
        %s227 = smul.addr %s226, 8
        %s228 = scalar_lea.vmem %s2, %s227
        %p229 = pneg %p103
        %p230 = pneg %p100
        %p231 = scmp.lt.s32.totalorder %s23, 0
        %s232 = scalar_select %p231, %s23, 0
        %s233 = smul.addr %s232, 8
        %s234 = scalar_lea.vmem %s3, %s233
        %p235 = pneg %p129
        %p236 = pneg %p126
        %p237 = pneg %p157
        %p238 = pneg %p154
        %s239 = sand.u32 %s144, 1
        %s240 = scalar_lea.sflag [#allocation3], %s239
        %s241 = sand.u32 %s144, 1
        %s242 = smul.addr %s241, 8
        %s243 = scalar_lea.vmem [#allocation2], %s242
        %p244 = scmp.lt.s32.totalorder %s22, 1
        %s245 = scalar_select %p244, %s22, 1
        %s246 = smul.addr %s245, 32
        %s247 = smul.addr %s246, 8
        %s248 = scalar_lea.vmem %s0, %s247
        %p249 = scmp.lt.s32.totalorder %s23, 0
        %s250 = scalar_select %p249, %s23, 0
        %s251 = smul.addr %s250, 8
        %s252 = scalar_lea.vmem %s1, %s251
        %p253 = scmp.lt.s32.totalorder %s23, 0
        %s254 = scalar_select %p253, %s23, 0
        %s255 = smul.addr %s254, 8
        %s256 = scalar_lea.vmem %s2, %s255
        %p257 = scmp.lt.s32.totalorder %s23, 0
        %s258 = scalar_select %p257, %s23, 0
        %s259 = smul.addr %s258, 8
        %s260 = scalar_lea.vmem %s3, %s259
        %v261 = vld [vmem:[%s248] sm:$0xff]
        %v262 = vld [vmem:[%s248 + $0x8] sm:$0xff]
        %v263 = vld [vmem:[%s248 + $0x10] sm:$0xff]
        %v264 = vld [vmem:[%s248 + $0x18] sm:$0xff]
        %v265 = vld [vmem:[%s248 + $0x20] sm:$0xff]
        %v266 = vld [vmem:[%s248 + $0x28] sm:$0xff]
        %v267 = vld [vmem:[%s248 + $0x30] sm:$0xff]
        %v268 = vld [vmem:[%s248 + $0x38] sm:$0xff]
        %v269 = vld [vmem:[%s248 + $0x40] sm:$0xff]
        %v270 = vld [vmem:[%s248 + $0x48] sm:$0xff]
        %v271 = vld [vmem:[%s248 + $0x50] sm:$0xff]
        %v272 = vld [vmem:[%s248 + $0x58] sm:$0xff]
        %v273 = vld [vmem:[%s248 + $0x60] sm:$0xff]
        %v274 = vld [vmem:[%s248 + $0x68] sm:$0xff]
        %v275 = vld [vmem:[%s248 + $0x70] sm:$0xff]
        %v276 = vld [vmem:[%s248 + $0x78] sm:$0xff]
        %v277 = vld [vmem:[%s248 + $0x80] sm:$0xff]
        %v278 = vld [vmem:[%s248 + $0x88] sm:$0xff]
        %v279 = vld [vmem:[%s248 + $0x90] sm:$0xff]
        %v280 = vld [vmem:[%s248 + $0x98] sm:$0xff]
        %v281 = vld [vmem:[%s248 + $0xa0] sm:$0xff]
        %v282 = vld [vmem:[%s248 + $0xa8] sm:$0xff]
        %v283 = vld [vmem:[%s248 + $0xb0] sm:$0xff]
        %v284 = vld [vmem:[%s248 + $0xb8] sm:$0xff]
        %v285 = vld [vmem:[%s248 + $0xc0] sm:$0xff]
        %v286 = vld [vmem:[%s248 + $0xc8] sm:$0xff]
        %v287 = vld [vmem:[%s248 + $0xd0] sm:$0xff]
        %v288 = vld [vmem:[%s248 + $0xd8] sm:$0xff]
        %v289 = vld [vmem:[%s248 + $0xe0] sm:$0xff]
        %v290 = vld [vmem:[%s248 + $0xe8] sm:$0xff]
        %v291 = vld [vmem:[%s248 + $0xf0] sm:$0xff]
        %v292 = vld [vmem:[%s248 + $0xf8] sm:$0xff]
        %v293 = vld [vmem:[%s252] sm:$0xff]
        %s294 = scalar_lea.vmem %s252, 8
        %v295 = vld [vmem:[%s294] sm:$0xff]
        %328 = vrot.lane.b32.xlu0 %v261, 127
        %v329 = vpop.permute.xlu0 %328
        %330 = vrot.lane.b32.xlu0 %v262, 127
        %v331 = vpop.permute.xlu0 %330
        %332 = vrot.lane.b32.xlu0 %v263, 127
        %v333 = vpop.permute.xlu0 %332
        %334 = vrot.lane.b32.xlu0 %v264, 127
        %v335 = vpop.permute.xlu0 %334
        %336 = vrot.lane.b32.xlu0 %v265, 127
        %v337 = vpop.permute.xlu0 %336
        %338 = vrot.lane.b32.xlu0 %v266, 127
        %v339 = vpop.permute.xlu0 %338
        %340 = vrot.lane.b32.xlu0 %v267, 127
        %v341 = vpop.permute.xlu0 %340
        %342 = vrot.lane.b32.xlu0 %v268, 127
        %v343 = vpop.permute.xlu0 %342
        %344 = vrot.lane.b32.xlu0 %v269, 127
        %v345 = vpop.permute.xlu0 %344
        %346 = vrot.lane.b32.xlu0 %v270, 127
        %v347 = vpop.permute.xlu0 %346
        %348 = vrot.lane.b32.xlu0 %v271, 127
        %v349 = vpop.permute.xlu0 %348
        %350 = vrot.lane.b32.xlu0 %v272, 127
        %v351 = vpop.permute.xlu0 %350
        %352 = vrot.lane.b32.xlu0 %v273, 127
        %v353 = vpop.permute.xlu0 %352
        %354 = vrot.lane.b32.xlu0 %v274, 127
        %v355 = vpop.permute.xlu0 %354
        %356 = vrot.lane.b32.xlu0 %v275, 127
        %v357 = vpop.permute.xlu0 %356
        %358 = vrot.lane.b32.xlu0 %v276, 127
        %v359 = vpop.permute.xlu0 %358
        %360 = vrot.lane.b32.xlu0 %v277, 127
        %v361 = vpop.permute.xlu0 %360
        %362 = vrot.lane.b32.xlu0 %v278, 127
        %v363 = vpop.permute.xlu0 %362
        %364 = vrot.lane.b32.xlu0 %v279, 127
        %v365 = vpop.permute.xlu0 %364
        %366 = vrot.lane.b32.xlu0 %v280, 127
        %v367 = vpop.permute.xlu0 %366
        %368 = vrot.lane.b32.xlu0 %v281, 127
        %v369 = vpop.permute.xlu0 %368
        %370 = vrot.lane.b32.xlu0 %v282, 127
        %v371 = vpop.permute.xlu0 %370
        %372 = vrot.lane.b32.xlu0 %v283, 127
        %v373 = vpop.permute.xlu0 %372
        %374 = vrot.lane.b32.xlu0 %v284, 127
        %v375 = vpop.permute.xlu0 %374
        %376 = vrot.lane.b32.xlu0 %v285, 127
        %v377 = vpop.permute.xlu0 %376
        %378 = vrot.lane.b32.xlu0 %v286, 127
        %v379 = vpop.permute.xlu0 %378
        %380 = vrot.lane.b32.xlu0 %v287, 127
        %v381 = vpop.permute.xlu0 %380
        %382 = vrot.lane.b32.xlu0 %v288, 127
        %v383 = vpop.permute.xlu0 %382
        %384 = vrot.lane.b32.xlu0 %v289, 127
        %v385 = vpop.permute.xlu0 %384
        %386 = vrot.lane.b32.xlu0 %v290, 127
        %v387 = vpop.permute.xlu0 %386
        %388 = vrot.lane.b32.xlu0 %v291, 127
        %v389 = vpop.permute.xlu0 %388
        %390 = vrot.lane.b32.xlu0 %v292, 127
        %v391 = vpop.permute.xlu0 %390
        %vm392 = vcmask 1039360
        %v393 = vsel %vm392, %v329, %v331
        %v394 = vsel %vm392, %v333, %v335
        %v395 = vsel %vm392, %v337, %v339
        %v396 = vsel %vm392, %v341, %v343
        %v397 = vsel %vm392, %v345, %v347
        %v398 = vsel %vm392, %v349, %v351
        %v399 = vsel %vm392, %v353, %v355
        %v400 = vsel %vm392, %v357, %v359
        %v401 = vsel %vm392, %v361, %v363
        %v402 = vsel %vm392, %v365, %v367
        %v403 = vsel %vm392, %v369, %v371
        %v404 = vsel %vm392, %v373, %v375
        %v405 = vsel %vm392, %v377, %v379
        %v406 = vsel %vm392, %v381, %v383
        %v407 = vsel %vm392, %v385, %v387
        %v408 = vsel %vm392, %v389, %v391
        %425 = vmatprep.subr.mxu0 0.0
        %426 = vmatpush1.msra.mxu0 %v393
        %427 = vmatprep.subr.mxu0 0.0
        %428 = vmatpush1.msra.mxu0 %v394
        %429 = vmatprep.subr.mxu0 0.0
        %430 = vmatpush1.msra.mxu0 %v395
        %431 = vmatprep.subr.mxu0 0.0
        %432 = vmatpush1.msra.mxu0 %v396
        %433 = vmatprep.subr.mxu0 0.0
        %434 = vmatpush1.msra.mxu0 %v397
        %435 = vmatprep.subr.mxu0 0.0
        %436 = vmatpush1.msra.mxu0 %v398
        %437 = vmatprep.subr.mxu0 0.0
        %438 = vmatpush1.msra.mxu0 %v399
        %439 = vmatprep.subr.mxu0 0.0
        %440 = vmatpush1.msra.mxu0 %v400
        %441 = vmatprep.subr.mxu0 0.0
        %442 = vmatpush1.msra.mxu0 %v401
        %443 = vmatprep.subr.mxu0 0.0
        %444 = vmatpush1.msra.mxu0 %v402
        %445 = vmatprep.subr.mxu0 0.0
        %446 = vmatpush1.msra.mxu0 %v403
        %447 = vmatprep.subr.mxu0 0.0
        %448 = vmatpush1.msra.mxu0 %v404
        %449 = vmatprep.subr.mxu0 0.0
        %450 = vmatpush1.msra.mxu0 %v405
        %451 = vmatprep.subr.mxu0 0.0
        %452 = vmatpush1.msra.mxu0 %v406
        %453 = vmatprep.subr.mxu0 0.0
        %454 = vmatpush1.msra.mxu0 %v407
        %455 = vmatprep.subr.mxu0 0.0
        %456 = vmatpush1.msra.mxu0 %v408
        %457 = vmatprep.subr.mxu0 0.0
        %458 = vmatpush1.msra.mxu0 0.0
        %459 = vmatprep.subr.mxu0 0.0
        %460 = vmatpush1.msra.mxu0 0.0
        %461 = vmatprep.subr.mxu0 0.0
        %462 = vmatpush1.msra.mxu0 0.0
        %463 = vmatprep.subr.mxu0 0.0
        %464 = vmatpush1.msra.mxu0 0.0
        %465 = vmatprep.subr.mxu0 0.0
        %466 = vmatpush1.msra.mxu0 0.0
        %467 = vmatprep.subr.mxu0 0.0
        %468 = vmatpush1.msra.mxu0 0.0
        %469 = vmatprep.subr.mxu0 0.0
        %470 = vmatpush1.msra.mxu0 0.0
        %471 = vmatprep.subr.mxu0 0.0
        %472 = vmatpush1.msra.mxu0 0.0
        %473 = vmatprep.subr.mxu0 0.0
        %474 = vmatpush1.msra.mxu0 0.0
        %475 = vmatprep.subr.mxu0 0.0
        %476 = vmatpush1.msra.mxu0 0.0
        %477 = vmatprep.subr.mxu0 0.0
        %478 = vmatpush1.msra.mxu0 0.0
        %479 = vmatprep.subr.mxu0 0.0
        %480 = vmatpush1.msra.mxu0 0.0
        %481 = vmatprep.subr.mxu0 0.0
        %482 = vmatpush1.msra.mxu0 0.0
        %483 = vmatprep.subr.mxu0 0.0
        %484 = vmatpush1.msra.mxu0 0.0
        %485 = vmatprep.subr.mxu0 0.0
        %486 = vmatpush1.msra.mxu0 0.0
        %487 = vmatprep.subr.mxu0 0.0
        %488 = vmatpush1.msra.mxu0 0.0
        %489 = vmatprep.mubr.f32.mxu0 0.0
        %490 = vmatmul.mubr.f32.gmra.mrb[0].mxu0 %v295
        %v491 = vpop.f32.mrb[0].mxu0
        %v492 = vadd.f32 0.0, %v491
        %v493 = vpop.f32.mrb[0].mxu0
        %494 = vdwg.mxu0
        %495 = vmatprep.subr.mxu0 0.0
        %496 = vmatpush1.msra.mxu0 %v261
        %497 = vmatprep.subr.mxu0 0.0
        %498 = vmatpush1.msra.mxu0 %v263
        %499 = vmatprep.subr.mxu0 0.0
        %500 = vmatpush1.msra.mxu0 %v265
        %501 = vmatprep.subr.mxu0 0.0
        %502 = vmatpush1.msra.mxu0 %v267
        %503 = vmatprep.subr.mxu0 0.0
        %504 = vmatpush1.msra.mxu0 %v269
        %505 = vmatprep.subr.mxu0 0.0
        %506 = vmatpush1.msra.mxu0 %v271
        %507 = vmatprep.subr.mxu0 0.0
        %508 = vmatpush1.msra.mxu0 %v273
        %509 = vmatprep.subr.mxu0 0.0
        %510 = vmatpush1.msra.mxu0 %v275
        %511 = vmatprep.subr.mxu0 0.0
        %512 = vmatpush1.msra.mxu0 %v277
        %513 = vmatprep.subr.mxu0 0.0
        %514 = vmatpush1.msra.mxu0 %v279
        %515 = vmatprep.subr.mxu0 0.0
        %516 = vmatpush1.msra.mxu0 %v281
        %517 = vmatprep.subr.mxu0 0.0
        %518 = vmatpush1.msra.mxu0 %v283
        %519 = vmatprep.subr.mxu0 0.0
        %520 = vmatpush1.msra.mxu0 %v285
        %521 = vmatprep.subr.mxu0 0.0
        %522 = vmatpush1.msra.mxu0 %v287
        %523 = vmatprep.subr.mxu0 0.0
        %524 = vmatpush1.msra.mxu0 %v289
        %525 = vmatprep.subr.mxu0 0.0
        %526 = vmatpush1.msra.mxu0 %v291
        %527 = vmatprep.subr.mxu0 0.0
        %528 = vmatpush1.msra.mxu0 0.0
        %529 = vmatprep.subr.mxu0 0.0
        %530 = vmatpush1.msra.mxu0 0.0
        %531 = vmatprep.subr.mxu0 0.0
        %532 = vmatpush1.msra.mxu0 0.0
        %533 = vmatprep.subr.mxu0 0.0
        %534 = vmatpush1.msra.mxu0 0.0
        %535 = vmatprep.subr.mxu0 0.0
        %536 = vmatpush1.msra.mxu0 0.0
        %537 = vmatprep.subr.mxu0 0.0
        %538 = vmatpush1.msra.mxu0 0.0
        %539 = vmatprep.subr.mxu0 0.0
        %540 = vmatpush1.msra.mxu0 0.0
        %541 = vmatprep.subr.mxu0 0.0
        %542 = vmatpush1.msra.mxu0 0.0
        %543 = vmatprep.subr.mxu0 0.0
        %544 = vmatpush1.msra.mxu0 0.0
        %545 = vmatprep.subr.mxu0 0.0
        %546 = vmatpush1.msra.mxu0 0.0
        %547 = vmatprep.subr.mxu0 0.0
        %548 = vmatpush1.msra.mxu0 0.0
        %549 = vmatprep.subr.mxu0 0.0
        %550 = vmatpush1.msra.mxu0 0.0
        %551 = vmatprep.subr.mxu0 0.0
        %552 = vmatpush1.msra.mxu0 0.0
        %553 = vmatprep.subr.mxu0 0.0
        %554 = vmatpush1.msra.mxu0 0.0
        %555 = vmatprep.subr.mxu0 0.0
        %556 = vmatpush1.msra.mxu0 0.0
        %557 = vmatprep.subr.mxu0 0.0
        %558 = vmatpush1.msra.mxu0 0.0
        %559 = vmatprep.mubr.f32.mxu0 0.0
        %560 = vmatmul.mubr.f32.gmra.mrb[0].mxu0 %v293
        %v561 = vpop.f32.mrb[0].mxu0
        %v562 = vadd.f32 %v492, %v561
        %v563 = vpop.f32.mrb[0].mxu0
        %564 = vdwg.mxu0
        %s565 = scalar_lea.vmem %s252, 16
        %v566 = vld [vmem:[%s565] sm:$0xff]
        %567 = vrot.lane.b32.xlu0 %v261, 126
        %v568 = vpop.permute.xlu0 %567
        %569 = vrot.lane.b32.xlu0 %v262, 126
        %v570 = vpop.permute.xlu0 %569
        %571 = vrot.lane.b32.xlu0 %v263, 126
        %v572 = vpop.permute.xlu0 %571
        %573 = vrot.lane.b32.xlu0 %v264, 126
        %v574 = vpop.permute.xlu0 %573
        %575 = vrot.lane.b32.xlu0 %v265, 126
        %v576 = vpop.permute.xlu0 %575
        %577 = vrot.lane.b32.xlu0 %v266, 126
        %v578 = vpop.permute.xlu0 %577
        %579 = vrot.lane.b32.xlu0 %v267, 126
        %v580 = vpop.permute.xlu0 %579
        %581 = vrot.lane.b32.xlu0 %v268, 126
        %v582 = vpop.permute.xlu0 %581
        %583 = vrot.lane.b32.xlu0 %v269, 126
        %v584 = vpop.permute.xlu0 %583
        %585 = vrot.lane.b32.xlu0 %v270, 126
        %v586 = vpop.permute.xlu0 %585
        %587 = vrot.lane.b32.xlu0 %v271, 126
        %v588 = vpop.permute.xlu0 %587
        %589 = vrot.lane.b32.xlu0 %v272, 126
        %v590 = vpop.permute.xlu0 %589
        %591 = vrot.lane.b32.xlu0 %v273, 126
        %v592 = vpop.permute.xlu0 %591
        %593 = vrot.lane.b32.xlu0 %v274, 126
        %v594 = vpop.permute.xlu0 %593
        %595 = vrot.lane.b32.xlu0 %v275, 126
        %v596 = vpop.permute.xlu0 %595
        %597 = vrot.lane.b32.xlu0 %v276, 126
        %v598 = vpop.permute.xlu0 %597
        %599 = vrot.lane.b32.xlu0 %v277, 126
        %v600 = vpop.permute.xlu0 %599
        %601 = vrot.lane.b32.xlu0 %v278, 126
        %v602 = vpop.permute.xlu0 %601
        %603 = vrot.lane.b32.xlu0 %v279, 126
        %v604 = vpop.permute.xlu0 %603
        %605 = vrot.lane.b32.xlu0 %v280, 126
        %v606 = vpop.permute.xlu0 %605
        %607 = vrot.lane.b32.xlu0 %v281, 126
        %v608 = vpop.permute.xlu0 %607
        %609 = vrot.lane.b32.xlu0 %v282, 126
        %v610 = vpop.permute.xlu0 %609
        %611 = vrot.lane.b32.xlu0 %v283, 126
        %v612 = vpop.permute.xlu0 %611
        %613 = vrot.lane.b32.xlu0 %v284, 126
        %v614 = vpop.permute.xlu0 %613
        %615 = vrot.lane.b32.xlu0 %v285, 126
        %v616 = vpop.permute.xlu0 %615
        %617 = vrot.lane.b32.xlu0 %v286, 126
        %v618 = vpop.permute.xlu0 %617
        %619 = vrot.lane.b32.xlu0 %v287, 126
        %v620 = vpop.permute.xlu0 %619
        %621 = vrot.lane.b32.xlu0 %v288, 126
        %v622 = vpop.permute.xlu0 %621
        %623 = vrot.lane.b32.xlu0 %v289, 126
        %v624 = vpop.permute.xlu0 %623
        %625 = vrot.lane.b32.xlu0 %v290, 126
        %v626 = vpop.permute.xlu0 %625
        %627 = vrot.lane.b32.xlu0 %v291, 126
        %v628 = vpop.permute.xlu0 %627
        %629 = vrot.lane.b32.xlu0 %v292, 126
        %v630 = vpop.permute.xlu0 %629
        %vm631 = vcmask 1031168
        %v632 = vsel %vm631, %v568, %v570
        %v633 = vsel %vm631, %v572, %v574
        %v634 = vsel %vm631, %v576, %v578
        %v635 = vsel %vm631, %v580, %v582
        %v636 = vsel %vm631, %v584, %v586
        %v637 = vsel %vm631, %v588, %v590
        %v638 = vsel %vm631, %v592, %v594
        %v639 = vsel %vm631, %v596, %v598
        %v640 = vsel %vm631, %v600, %v602
        %v641 = vsel %vm631, %v604, %v606
        %v642 = vsel %vm631, %v608, %v610
        %v643 = vsel %vm631, %v612, %v614
        %v644 = vsel %vm631, %v616, %v618
        %v645 = vsel %vm631, %v620, %v622
        %v646 = vsel %vm631, %v624, %v626
        %v647 = vsel %vm631, %v628, %v630
        %664 = vmatprep.subr.mxu0 0.0
        %665 = vmatpush1.msra.mxu0 %v632
        %666 = vmatprep.subr.mxu0 0.0
        %667 = vmatpush1.msra.mxu0 %v633
        %668 = vmatprep.subr.mxu0 0.0
        %669 = vmatpush1.msra.mxu0 %v634
        %670 = vmatprep.subr.mxu0 0.0
        %671 = vmatpush1.msra.mxu0 %v635
        %672 = vmatprep.subr.mxu0 0.0
        %673 = vmatpush1.msra.mxu0 %v636
        %674 = vmatprep.subr.mxu0 0.0
        %675 = vmatpush1.msra.mxu0 %v637
        %676 = vmatprep.subr.mxu0 0.0
        %677 = vmatpush1.msra.mxu0 %v638
        %678 = vmatprep.subr.mxu0 0.0
        %679 = vmatpush1.msra.mxu0 %v639
        %680 = vmatprep.subr.mxu0 0.0
        %681 = vmatpush1.msra.mxu0 %v640
        %682 = vmatprep.subr.mxu0 0.0
        %683 = vmatpush1.msra.mxu0 %v641
        %684 = vmatprep.subr.mxu0 0.0
        %685 = vmatpush1.msra.mxu0 %v642
        %686 = vmatprep.subr.mxu0 0.0
        %687 = vmatpush1.msra.mxu0 %v643
        %688 = vmatprep.subr.mxu0 0.0
        %689 = vmatpush1.msra.mxu0 %v644
        %690 = vmatprep.subr.mxu0 0.0
        %691 = vmatpush1.msra.mxu0 %v645
        %692 = vmatprep.subr.mxu0 0.0
        %693 = vmatpush1.msra.mxu0 %v646
        %694 = vmatprep.subr.mxu0 0.0
        %695 = vmatpush1.msra.mxu0 %v647
        %696 = vmatprep.subr.mxu0 0.0
        %697 = vmatpush1.msra.mxu0 0.0
        %698 = vmatprep.subr.mxu0 0.0
        %699 = vmatpush1.msra.mxu0 0.0
        %700 = vmatprep.subr.mxu0 0.0
        %701 = vmatpush1.msra.mxu0 0.0
        %702 = vmatprep.subr.mxu0 0.0
        %703 = vmatpush1.msra.mxu0 0.0
        %704 = vmatprep.subr.mxu0 0.0
        %705 = vmatpush1.msra.mxu0 0.0
        %706 = vmatprep.subr.mxu0 0.0
        %707 = vmatpush1.msra.mxu0 0.0
        %708 = vmatprep.subr.mxu0 0.0
        %709 = vmatpush1.msra.mxu0 0.0
        %710 = vmatprep.subr.mxu0 0.0
        %711 = vmatpush1.msra.mxu0 0.0
        %712 = vmatprep.subr.mxu0 0.0
        %713 = vmatpush1.msra.mxu0 0.0
        %714 = vmatprep.subr.mxu0 0.0
        %715 = vmatpush1.msra.mxu0 0.0
        %716 = vmatprep.subr.mxu0 0.0
        %717 = vmatpush1.msra.mxu0 0.0
        %718 = vmatprep.subr.mxu0 0.0
        %719 = vmatpush1.msra.mxu0 0.0
        %720 = vmatprep.subr.mxu0 0.0
        %721 = vmatpush1.msra.mxu0 0.0
        %722 = vmatprep.subr.mxu0 0.0
        %723 = vmatpush1.msra.mxu0 0.0
        %724 = vmatprep.subr.mxu0 0.0
        %725 = vmatpush1.msra.mxu0 0.0
        %726 = vmatprep.subr.mxu0 0.0
        %727 = vmatpush1.msra.mxu0 0.0
        %728 = vmatprep.mubr.f32.mxu0 0.0
        %729 = vmatmul.mubr.f32.gmra.mrb[0].mxu0 %v566
        %v730 = vpop.f32.mrb[0].mxu0
        %v731 = vadd.f32 0.0, %v730
        %v732 = vpop.f32.mrb[0].mxu0
        %733 = vdwg.mxu0
        %v734 = vadd.f32 %v562, %v731
        %v735 = vld [vmem:[%s256] sm:$0xff]
        %737 = vset.pattern.permute.xlu0 0
        %738 = vperm.xlu0 %737, %v735
        %v739 = vpop.permute.xlu0 %738
        %v741 = vmul.f32 %v734, %v739
        %v742 = vld [vmem:[%s260] sm:$0xff]
        %744 = vset.pattern.permute.xlu0 0
        %745 = vperm.xlu0 %744, %v742
        %v746 = vpop.permute.xlu0 %745
        %v748 = vadd.f32 %v741, %v746
        %v749 = vmax.f32 %v748, 0.0
        %750 = vst [vmem:[%s243] sm:$0xff] %v749
        %s751 = sand.u32 %s144, 1
        %s752 = scalar_lea.sflag [#allocation3], %s751
        %s753 = sand.u32 %s144, 1
        %s754 = smul.addr %s753, 8
        %s755 = scalar_lea.vmem [#allocation2], %s754
        // Predicated region
        $region37: #{conv1d_bn_relu.1} parent=35 // pred_check
          %p756 = pneg %p154
        $region38: #{conv1d_bn_relu.1} parent=35 // pred_check_branch
          %758 = sbr.rel (%p756) target = $region40
        $region39: #{conv1d_bn_relu.1} parent=35 // pred_region
          %s760 = ssub.s32 128, 128
          %761 = vsyncadd %s752, %s760
          %s762 = sadd.s32 %s23, %s22
          %s763 = smul.addr %s762, 128
          %s764 = scalar_lea.hbm %s4, %s763
          %s766 = sshll.u32 %s755, 4
          %s767 = int_to_ptr.vmem [resolvable:$true] %s766
          %769 = dma.vmem_to_hbm [thread:$0]  %s767, 128, %s764, %s752
        $region40: #{conv1d_bn_relu.1} parent=35 // pred_fallthru
          _
      $region36: #{conv1d_bn_relu.1} parent=5 // pred_fallthru
        _
      %p770 = scmp.le.s32.totalorder 2, %s13
      // Predicated region
      $region41: #{conv1d_bn_relu.1} parent=5 // pred_check
        %p771 = pneg %p770
      $region42: #{conv1d_bn_relu.1} parent=5 // pred_check_branch
        %773 = sbr.rel (%p771) target = $region44
      $region43: #{conv1d_bn_relu.1} parent=5 // pred_region
        %s774 = ssub.s32 %s13, 2
        // Predicated region
        $region45: #{conv1d_bn_relu.1} parent=43 // pred_check
          %p775 = pneg %p160
        $region46: #{conv1d_bn_relu.1} parent=43 // pred_check_branch
          %777 = sbr.rel (%p775) target = $region48
        $region47: #{conv1d_bn_relu.1} parent=43 // pred_region
          %s778 = sand.u32 %s145, 1
          %s779 = scalar_lea.sflag [#allocation3], %s778
          %s780 = sand.u32 %s145, 1
          %s781 = smul.addr %s780, 8
          %s782 = scalar_lea.vmem [#allocation2], %s781
          %783 = dma.done %s779, 128
        $region48: #{conv1d_bn_relu.1} parent=43 // pred_fallthru
          _
      $region44: #{conv1d_bn_relu.1} parent=5 // pred_fallthru
        _
    $region6: #{conv1d_bn_relu.1} parent=1 // loop_footer
      %s17 = sadd.s32 1, %s13
    $region7: #{conv1d_bn_relu.1} parent=1 // loop_footer_branch
      %12 = sbr.rel target = $region3
    $region8: #{conv1d_bn_relu.1} parent=1 // loop_exit
      _
    %784 = vsyncpa [#allocation3], 1
    %s785 = scalar_lea.sflag [#allocation3], 1
    %786 = vsyncpa %s785, 1

</llo_original>
